<compile_context>
chip_gen: v7x
topology: tpu7x:2x2x1
jax: 0.10.0
libtpu: 0.0.40
codegen_flags: <defaults>
</compile_context>

<pallas_src>
import functools

import jax
import jax.numpy as jnp
from jax.experimental import pallas as pl
from jax.experimental.pallas import tpu as pltpu

LANE = 128
BN_EPS = 1e-5


def _rup(n, m):
    return ((n + m - 1) // m) * m


# ------------------------------ Pallas kernel -------------------------------

def _mlp_kernel(num_hid, *refs):
    """Fused (Linear -> folded-BN -> ReLU) * num_hid -> Linear, all in VMEM.

    refs = (x_ref,
            w_1, ss_1, ..., w_num_hid, ss_num_hid,   # ss: (2, D) = [scale; shift]
            w_out, b_out,
            o_ref)
    """
    x_ref = refs[0]
    o_ref = refs[-1]
    p = refs[1:-1]

    x = x_ref[...]
    for i in range(num_hid):
        w_ref = p[2 * i]
        ss_ref = p[2 * i + 1]
        y = jnp.dot(x, w_ref[...], preferred_element_type=jnp.float32)
        # Linear bias already folded into shift (row 1); BN scale in row 0.
        x = jnp.maximum(y * ss_ref[0:1, :] + ss_ref[1:2, :], 0.0)

    w_out = p[2 * num_hid]
    b_out = p[2 * num_hid + 1]
    y = jnp.dot(x, w_out[...], preferred_element_type=jnp.float32) + b_out[...]
    o_ref[...] = y.astype(o_ref.dtype)


# ------------------------------ Model wrapper --------------------------------

def init_mlp_params(key, input_size, output_size, parameter_dict):
    nodes = [
        parameter_dict["hidden_number_1"],
        parameter_dict["hidden_number_2"],
        parameter_dict["hidden_number_3"],
        parameter_dict["hidden_number_4"],
    ]
    num_hid = parameter_dict["num_hid_layers"]
    dims = [input_size] + nodes[:num_hid]

    hidden = []
    for i in range(num_hid):
        d_in, d_out = dims[i], dims[i + 1]
        key, kw, kb, kg, kbeta, km, kv = jax.random.split(key, 7)
        lim = 1.0 / jnp.sqrt(d_in)
        w = jax.random.uniform(kw, (d_in, d_out), jnp.float32, -lim, lim)
        b = jax.random.uniform(kb, (1, d_out), jnp.float32, -lim, lim)
        gamma = 1.0 + 0.1 * jax.random.normal(kg, (1, d_out), jnp.float32)
        beta = 0.1 * jax.random.normal(kbeta, (1, d_out), jnp.float32)
        running_mean = 0.1 * jax.random.normal(km, (1, d_out), jnp.float32)
        running_var = jnp.abs(
            1.0 + 0.1 * jax.random.normal(kv, (1, d_out), jnp.float32))
        # Fold eval-mode BN into scale/shift, then fold the Linear bias into shift.
        scale = gamma / jnp.sqrt(running_var + BN_EPS)
        shift = beta - running_mean * scale + b * scale
        hidden.append((w, scale, shift))

    d_in = dims[num_hid]
    key, kw, kb = jax.random.split(key, 3)
    lim = 1.0 / jnp.sqrt(d_in)
    out_w = jax.random.uniform(kw, (d_in, output_size), jnp.float32, -lim, lim)
    out_b = jax.random.uniform(kb, (1, output_size), jnp.float32, -lim, lim)

    # Lane-pad everything to multiples of 128 once, at init time.
    dims_pad = [_rup(d, LANE) for d in dims] + [_rup(output_size, LANE)]
    padded_hidden = []
    for i, (w, scale, shift) in enumerate(hidden):
        w_pad = (jnp.zeros((dims_pad[i], dims_pad[i + 1]), jnp.float32)
                 .at[:w.shape[0], :w.shape[1]].set(w))
        ss = (jnp.zeros((2, dims_pad[i + 1]), jnp.float32)
              .at[0, :scale.shape[1]].set(scale[0])
              .at[1, :shift.shape[1]].set(shift[0]))
        padded_hidden.append((w_pad, ss))
    out_w_pad = (jnp.zeros((dims_pad[num_hid], dims_pad[num_hid + 1]), jnp.float32)
                 .at[:out_w.shape[0], :out_w.shape[1]].set(out_w))
    out_b_pad = (jnp.zeros((1, dims_pad[num_hid + 1]), jnp.float32)
                 .at[:, :output_size].set(out_b))

    return {
        "num_hid": num_hid,
        "output_size": output_size,
        "hidden": hidden,                # unpadded, bias-folded (reference path)
        "out_w": out_w, "out_b": out_b,
        "padded": {
            "dims_pad": dims_pad,
            "hidden": padded_hidden,
            "out_w": out_w_pad,
            "out_b": out_b_pad,
        },
    }


def mlp_forward(params, x, *, max_batch_tile=256):
    """Single fused pallas_call over a 1-D batch grid."""
    num_hid = params["num_hid"]
    pw = params["padded"]
    B, Din = x.shape
    Din_pad = pw["dims_pad"][0]
    Dout_pad = pw["out_w"].shape[1]

    tb = min(max_batch_tile, _rup(B, 8))      # batch tile (multiple of 8 sublanes)
    Bpad = _rup(B, tb)
    n_tiles = Bpad // tb

    x_pad = jnp.zeros((Bpad, Din_pad), x.dtype).at[:B, :Din].set(x)

    inputs = [x_pad]
    in_specs = [pl.BlockSpec((tb, Din_pad), lambda i: (i, 0))]
    for (w, ss) in pw["hidden"]:
        inputs += [w, ss]
        # Constant index_map: weights DMA'd once, resident across grid steps.
        in_specs += [
            pl.BlockSpec(w.shape, lambda i: (0, 0)),
            pl.BlockSpec(ss.shape, lambda i: (0, 0)),
        ]
    inputs += [pw["out_w"], pw["out_b"]]
    in_specs += [
        pl.BlockSpec(pw["out_w"].shape, lambda i: (0, 0)),
        pl.BlockSpec(pw["out_b"].shape, lambda i: (0, 0)),
    ]

    out = pl.pallas_call(
        functools.partial(_mlp_kernel, num_hid),
        out_shape=jax.ShapeDtypeStruct((Bpad, Dout_pad), x.dtype),
        grid=(n_tiles,),
        in_specs=in_specs,
        out_specs=pl.BlockSpec((tb, Dout_pad), lambda i: (i, 0)),
        compiler_params=pltpu.CompilerParams(
            dimension_semantics=("parallel",)),
    )(*inputs)

    return out[:B, :params["output_size"]]


def mlp_forward_ref(params, x):
    # Pure-JAX reference (bias already folded into shift).
    for (w, scale, shift) in params["hidden"]:
        x = jnp.maximum((x @ w) * scale + shift, 0.0)
    return x @ params["out_w"] + params["out_b"]


# ----------------------------------- Main ------------------------------------

if __name__ == "__main__":
    input_size = 16
    output_size = 8
    batch = 8
    parameter_dict = {
        "hidden_number_1": 32,
        "hidden_number_2": 64,
        "hidden_number_3": 32,
        "hidden_number_4": 16,
        "dropout": 0.1,          # inactive (eval mode)
        "num_hid_layers": 4,
    }

    key = jax.random.PRNGKey(0)
    key, kx = jax.random.split(key)
    x = jax.random.normal(kx, (batch, input_size), jnp.float32)

    params = init_mlp_params(key, input_size, output_size, parameter_dict)

    out = jax.block_until_ready(mlp_forward(params, x))
    ref = jax.block_until_ready(mlp_forward_ref(params, x))

    assert out.shape == (batch, output_size)
    assert jnp.allclose(out, ref, atol=1e-4, rtol=1e-4)

    print("KERNEL_OK")
</pallas_src>

<mosaic_0001>
module attributes {stable_mosaic.version = 11 : i64} {
  func.func @_mlp_kernel(%arg0: i32, %arg1: memref<8x128xf32, #tpu.memory_space<vmem>>, %arg2: memref<128x128xf32, #tpu.memory_space<vmem>>, %arg3: memref<2x128xf32, #tpu.memory_space<vmem>>, %arg4: memref<128x128xf32, #tpu.memory_space<vmem>>, %arg5: memref<2x128xf32, #tpu.memory_space<vmem>>, %arg6: memref<128x128xf32, #tpu.memory_space<vmem>>, %arg7: memref<2x128xf32, #tpu.memory_space<vmem>>, %arg8: memref<128x128xf32, #tpu.memory_space<vmem>>, %arg9: memref<2x128xf32, #tpu.memory_space<vmem>>, %arg10: memref<128x128xf32, #tpu.memory_space<vmem>>, %arg11: memref<1x128xf32, #tpu.memory_space<vmem>>, %arg12: memref<8x128xf32, #tpu.memory_space<vmem>>) attributes {dimension_semantics = [#tpu.dimension_semantics<parallel>], iteration_bounds = array<i64: 1>, scalar_prefetch = 0 : i64, scratch_operands = 0 : i64, tpu.core_type = #tpu.core_type<tc>, window_params = [{transform_indices = @transform_0, window_bounds = array<i64: 8, 128>}, {pipeline_mode = #tpu.pipeline_mode<synchronous>, transform_indices = @transform_1, window_bounds = array<i64: 128, 128>}, {pipeline_mode = #tpu.pipeline_mode<synchronous>, transform_indices = @transform_2, window_bounds = array<i64: 2, 128>}, {pipeline_mode = #tpu.pipeline_mode<synchronous>, transform_indices = @transform_3, window_bounds = array<i64: 128, 128>}, {pipeline_mode = #tpu.pipeline_mode<synchronous>, transform_indices = @transform_4, window_bounds = array<i64: 2, 128>}, {pipeline_mode = #tpu.pipeline_mode<synchronous>, transform_indices = @transform_5, window_bounds = array<i64: 128, 128>}, {pipeline_mode = #tpu.pipeline_mode<synchronous>, transform_indices = @transform_6, window_bounds = array<i64: 2, 128>}, {pipeline_mode = #tpu.pipeline_mode<synchronous>, transform_indices = @transform_7, window_bounds = array<i64: 128, 128>}, {pipeline_mode = #tpu.pipeline_mode<synchronous>, transform_indices = @transform_8, window_bounds = array<i64: 2, 128>}, {pipeline_mode = #tpu.pipeline_mode<synchronous>, transform_indices = @transform_9, window_bounds = array<i64: 128, 128>}, {pipeline_mode = #tpu.pipeline_mode<synchronous>, transform_indices = @transform_10, window_bounds = array<i64: 1, 128>}, {transform_indices = @transform_11, window_bounds = array<i64: 8, 128>}]} {
    %c0 = arith.constant 0 : index
    %c0_0 = arith.constant 0 : index
    %0 = vector.load %arg1[%c0, %c0_0] : memref<8x128xf32, #tpu.memory_space<vmem>>, vector<8x128xf32>
    %c0_1 = arith.constant 0 : index
    %c0_2 = arith.constant 0 : index
    %1 = vector.load %arg2[%c0_1, %c0_2] : memref<128x128xf32, #tpu.memory_space<vmem>>, vector<128x128xf32>
    %cst = arith.constant dense<0.000000e+00> : vector<8x128xf32>
    %2 = tpu.matmul %0, %1, %cst {dimension_numbers = #tpu.dot_dimension_numbers<[1], [0], [0], [1], [0, 0, 1, 1], [], []>} : vector<8x128xf32>, vector<128x128xf32>, vector<8x128xf32> -> vector<8x128xf32>
    %c0_3 = arith.constant 0 : index
    %c0_4 = arith.constant 0 : index
    %3 = vector.load %arg3[%c0_3, %c0_4] : memref<2x128xf32, #tpu.memory_space<vmem>>, vector<1x128xf32>
    %4 = vector.broadcast %3 : vector<1x128xf32> to vector<8x128xf32>
    %5 = arith.mulf %2, %4 : vector<8x128xf32>
    %c1 = arith.constant 1 : index
    %c0_5 = arith.constant 0 : index
    %6 = vector.load %arg3[%c1, %c0_5] : memref<2x128xf32, #tpu.memory_space<vmem>>, vector<1x128xf32>
    %7 = vector.broadcast %6 : vector<1x128xf32> to vector<8x128xf32>
    %8 = arith.addf %5, %7 : vector<8x128xf32>
    %cst_6 = arith.constant 0.000000e+00 : f32
    %9 = vector.broadcast %cst_6 : f32 to vector<8x128xf32>
    %10 = arith.maximumf %8, %9 : vector<8x128xf32>
    %c0_7 = arith.constant 0 : index
    %c0_8 = arith.constant 0 : index
    %11 = vector.load %arg4[%c0_7, %c0_8] : memref<128x128xf32, #tpu.memory_space<vmem>>, vector<128x128xf32>
    %cst_9 = arith.constant dense<0.000000e+00> : vector<8x128xf32>
    %12 = tpu.matmul %10, %11, %cst_9 {dimension_numbers = #tpu.dot_dimension_numbers<[1], [0], [0], [1], [0, 0, 1, 1], [], []>} : vector<8x128xf32>, vector<128x128xf32>, vector<8x128xf32> -> vector<8x128xf32>
    %c0_10 = arith.constant 0 : index
    %c0_11 = arith.constant 0 : index
    %13 = vector.load %arg5[%c0_10, %c0_11] : memref<2x128xf32, #tpu.memory_space<vmem>>, vector<1x128xf32>
    %14 = vector.broadcast %13 : vector<1x128xf32> to vector<8x128xf32>
    %15 = arith.mulf %12, %14 : vector<8x128xf32>
    %c1_12 = arith.constant 1 : index
    %c0_13 = arith.constant 0 : index
    %16 = vector.load %arg5[%c1_12, %c0_13] : memref<2x128xf32, #tpu.memory_space<vmem>>, vector<1x128xf32>
    %17 = vector.broadcast %16 : vector<1x128xf32> to vector<8x128xf32>
    %18 = arith.addf %15, %17 : vector<8x128xf32>
    %cst_14 = arith.constant 0.000000e+00 : f32
    %19 = vector.broadcast %cst_14 : f32 to vector<8x128xf32>
    %20 = arith.maximumf %18, %19 : vector<8x128xf32>
    %c0_15 = arith.constant 0 : index
    %c0_16 = arith.constant 0 : index
    %21 = vector.load %arg6[%c0_15, %c0_16] : memref<128x128xf32, #tpu.memory_space<vmem>>, vector<128x128xf32>
    %cst_17 = arith.constant dense<0.000000e+00> : vector<8x128xf32>
    %22 = tpu.matmul %20, %21, %cst_17 {dimension_numbers = #tpu.dot_dimension_numbers<[1], [0], [0], [1], [0, 0, 1, 1], [], []>} : vector<8x128xf32>, vector<128x128xf32>, vector<8x128xf32> -> vector<8x128xf32>
    %c0_18 = arith.constant 0 : index
    %c0_19 = arith.constant 0 : index
    %23 = vector.load %arg7[%c0_18, %c0_19] : memref<2x128xf32, #tpu.memory_space<vmem>>, vector<1x128xf32>
    %24 = vector.broadcast %23 : vector<1x128xf32> to vector<8x128xf32>
    %25 = arith.mulf %22, %24 : vector<8x128xf32>
    %c1_20 = arith.constant 1 : index
    %c0_21 = arith.constant 0 : index
    %26 = vector.load %arg7[%c1_20, %c0_21] : memref<2x128xf32, #tpu.memory_space<vmem>>, vector<1x128xf32>
    %27 = vector.broadcast %26 : vector<1x128xf32> to vector<8x128xf32>
    %28 = arith.addf %25, %27 : vector<8x128xf32>
    %cst_22 = arith.constant 0.000000e+00 : f32
    %29 = vector.broadcast %cst_22 : f32 to vector<8x128xf32>
    %30 = arith.maximumf %28, %29 : vector<8x128xf32>
    %c0_23 = arith.constant 0 : index
    %c0_24 = arith.constant 0 : index
    %31 = vector.load %arg8[%c0_23, %c0_24] : memref<128x128xf32, #tpu.memory_space<vmem>>, vector<128x128xf32>
    %cst_25 = arith.constant dense<0.000000e+00> : vector<8x128xf32>
    %32 = tpu.matmul %30, %31, %cst_25 {dimension_numbers = #tpu.dot_dimension_numbers<[1], [0], [0], [1], [0, 0, 1, 1], [], []>} : vector<8x128xf32>, vector<128x128xf32>, vector<8x128xf32> -> vector<8x128xf32>
    %c0_26 = arith.constant 0 : index
    %c0_27 = arith.constant 0 : index
    %33 = vector.load %arg9[%c0_26, %c0_27] : memref<2x128xf32, #tpu.memory_space<vmem>>, vector<1x128xf32>
    %34 = vector.broadcast %33 : vector<1x128xf32> to vector<8x128xf32>
    %35 = arith.mulf %32, %34 : vector<8x128xf32>
    %c1_28 = arith.constant 1 : index
    %c0_29 = arith.constant 0 : index
    %36 = vector.load %arg9[%c1_28, %c0_29] : memref<2x128xf32, #tpu.memory_space<vmem>>, vector<1x128xf32>
    %37 = vector.broadcast %36 : vector<1x128xf32> to vector<8x128xf32>
    %38 = arith.addf %35, %37 : vector<8x128xf32>
    %cst_30 = arith.constant 0.000000e+00 : f32
    %39 = vector.broadcast %cst_30 : f32 to vector<8x128xf32>
    %40 = arith.maximumf %38, %39 : vector<8x128xf32>
    %c0_31 = arith.constant 0 : index
    %c0_32 = arith.constant 0 : index
    %41 = vector.load %arg10[%c0_31, %c0_32] : memref<128x128xf32, #tpu.memory_space<vmem>>, vector<128x128xf32>
    %cst_33 = arith.constant dense<0.000000e+00> : vector<8x128xf32>
    %42 = tpu.matmul %40, %41, %cst_33 {dimension_numbers = #tpu.dot_dimension_numbers<[1], [0], [0], [1], [0, 0, 1, 1], [], []>} : vector<8x128xf32>, vector<128x128xf32>, vector<8x128xf32> -> vector<8x128xf32>
    %c0_34 = arith.constant 0 : index
    %c0_35 = arith.constant 0 : index
    %43 = vector.load %arg11[%c0_34, %c0_35] : memref<1x128xf32, #tpu.memory_space<vmem>>, vector<1x128xf32>
    %44 = vector.broadcast %43 : vector<1x128xf32> to vector<8x128xf32>
    %45 = arith.addf %42, %44 : vector<8x128xf32>
    %c0_36 = arith.constant 0 : index
    %c0_37 = arith.constant 0 : index
    %46 = vector.load %arg12[%c0_36, %c0_37] : memref<8x128xf32, #tpu.memory_space<vmem>>, vector<8x128xf32>
    tpu.vector_store %arg12[%c0_36, %c0_37], %45 {strides = array<i32>} : memref<8x128xf32, #tpu.memory_space<vmem>>, vector<8x128xf32>,
    return
  }
  func.func @transform_0(%arg0: i32) -> (i32, i32) {
    %c0_i32 = arith.constant 0 : i32
    %c0_i32_0 = arith.constant 0 : i32
    return %arg0, %c0_i32 : i32, i32
  }
  func.func @transform_1(%arg0: i32) -> (i32, i32) {
    %c0_i32 = arith.constant 0 : i32
    %c0_i32_0 = arith.constant 0 : i32
    %c0_i32_1 = arith.constant 0 : i32
    return %c0_i32, %c0_i32_0 : i32, i32
  }
  func.func @transform_2(%arg0: i32) -> (i32, i32) {
    %c0_i32 = arith.constant 0 : i32
    %c0_i32_0 = arith.constant 0 : i32
    %c0_i32_1 = arith.constant 0 : i32
    return %c0_i32, %c0_i32_0 : i32, i32
  }
  func.func @transform_3(%arg0: i32) -> (i32, i32) {
    %c0_i32 = arith.constant 0 : i32
    %c0_i32_0 = arith.constant 0 : i32
    %c0_i32_1 = arith.constant 0 : i32
    return %c0_i32, %c0_i32_0 : i32, i32
  }
  func.func @transform_4(%arg0: i32) -> (i32, i32) {
    %c0_i32 = arith.constant 0 : i32
    %c0_i32_0 = arith.constant 0 : i32
    %c0_i32_1 = arith.constant 0 : i32
    return %c0_i32, %c0_i32_0 : i32, i32
  }
  func.func @transform_5(%arg0: i32) -> (i32, i32) {
    %c0_i32 = arith.constant 0 : i32
    %c0_i32_0 = arith.constant 0 : i32
    %c0_i32_1 = arith.constant 0 : i32
    return %c0_i32, %c0_i32_0 : i32, i32
  }
  func.func @transform_6(%arg0: i32) -> (i32, i32) {
    %c0_i32 = arith.constant 0 : i32
    %c0_i32_0 = arith.constant 0 : i32
    %c0_i32_1 = arith.constant 0 : i32
    return %c0_i32, %c0_i32_0 : i32, i32
  }
  func.func @transform_7(%arg0: i32) -> (i32, i32) {
    %c0_i32 = arith.constant 0 : i32
    %c0_i32_0 = arith.constant 0 : i32
    %c0_i32_1 = arith.constant 0 : i32
    return %c0_i32, %c0_i32_0 : i32, i32
  }
  func.func @transform_8(%arg0: i32) -> (i32, i32) {
    %c0_i32 = arith.constant 0 : i32
    %c0_i32_0 = arith.constant 0 : i32
    %c0_i32_1 = arith.constant 0 : i32
    return %c0_i32, %c0_i32_0 : i32, i32
  }
  func.func @transform_9(%arg0: i32) -> (i32, i32) {
    %c0_i32 = arith.constant 0 : i32
    %c0_i32_0 = arith.constant 0 : i32
    %c0_i32_1 = arith.constant 0 : i32
    return %c0_i32, %c0_i32_0 : i32, i32
  }
  func.func @transform_10(%arg0: i32) -> (i32, i32) {
    %c0_i32 = arith.constant 0 : i32
    %c0_i32_0 = arith.constant 0 : i32
    %c0_i32_1 = arith.constant 0 : i32
    return %c0_i32, %c0_i32_0 : i32, i32
  }
  func.func @transform_11(%arg0: i32) -> (i32, i32) {
    %c0_i32 = arith.constant 0 : i32
    %c0_i32_0 = arith.constant 0 : i32
    return %arg0, %c0_i32 : i32, i32
  }
}

</mosaic_0001>

<llo_original>
// kernel: tpu_custom_call.1
$region0: #{tpu_custom_call.1}
  #allocation0 [shape = 'u32[]', space=smem, size = 0x4, offset = 0x4, fixed_abs, tag = 'smem constant byte address 0x4 - core index']
  #allocation1 [shape = 'u32[144,128]{1,0:T(1,128)}', space=vmem, size = 0x12000, scoped, tag = 'internal scratch']
  %s0 = inlined_call_operand.hbm [shape: f32[8,128], index: 0, kind: input, shape index: {}]
  %s1 = inlined_call_operand.hbm [shape: f32[128,128], index: 1, kind: input, shape index: {}]
  %s2 = inlined_call_operand.vmem [shape: f32[2,128], index: 2, kind: input, shape index: {}]
  %s3 = inlined_call_operand.hbm [shape: f32[128,128], index: 3, kind: input, shape index: {}]
  %s4 = inlined_call_operand.vmem [shape: f32[2,128], index: 4, kind: input, shape index: {}]
  %s5 = inlined_call_operand.hbm [shape: f32[128,128], index: 5, kind: input, shape index: {}]
  %s6 = inlined_call_operand.vmem [shape: f32[2,128], index: 6, kind: input, shape index: {}]
  %s7 = inlined_call_operand.hbm [shape: f32[128,128], index: 7, kind: input, shape index: {}]
  %s8 = inlined_call_operand.vmem [shape: f32[2,128], index: 8, kind: input, shape index: {}]
  %s9 = inlined_call_operand.hbm [shape: f32[128,128], index: 9, kind: input, shape index: {}]
  %s10 = inlined_call_operand.vmem [shape: f32[1,128], index: 10, kind: input, shape index: {}]
  %s11 = inlined_call_operand.hbm [shape: f32[8,128], index: 11, kind: output, shape index: {}]
  %s12 = sld [smem:[#allocation0]]
  $region78: #{tpu_custom_call.1} parent=0
    _
  %s14 = ssub.s32 1, %s12
  %s15 = scalar_select 0, %s14, %s12
  $region1: #{tpu_custom_call.1} parent=0
    #allocation2 [shape = 'u8[4096]{0}', space=vmem, size = 0x1000, scoped, tag = 'input window, operand 0, single buffered']
    #allocation3 [shape = 's32[1]{0}', space=sflag, size = 0x4, scoped, tag = 'scoped memory for tpu_custom_call.1']
    #allocation4 [shape = 's32[1]{0}', space=sflag, size = 0x4, scoped, tag = 'scoped memory for tpu_custom_call.1']
    #allocation5 [shape = 'u8[65536]{0}', space=vmem, size = 0x10000, scoped, tag = 'input window, operand 1, single buffered']
    #allocation6 [shape = 's32[1]{0}', space=sflag, size = 0x4, scoped, tag = 'scoped memory for tpu_custom_call.1']
    #allocation7 [shape = 'u8[65536]{0}', space=vmem, size = 0x10000, scoped, tag = 'input window, operand 3, single buffered']
    #allocation8 [shape = 'u8[65536]{0}', space=vmem, size = 0x10000, scoped, tag = 'input window, operand 5, single buffered']
    #allocation9 [shape = 's32[1]{0}', space=sflag, size = 0x4, scoped, tag = 'scoped memory for tpu_custom_call.1']
    #allocation10 [shape = 'u8[65536]{0}', space=vmem, size = 0x10000, scoped, tag = 'input window, operand 7, single buffered']
    #allocation11 [shape = 'u8[65536]{0}', space=vmem, size = 0x10000, scoped, tag = 'input window, operand 9, single buffered']
    #allocation12 [shape = 's32[1]{0}', space=sflag, size = 0x4, scoped, tag = 'scoped memory for tpu_custom_call.1']
    #allocation13 [shape = 'u8[4096]{0}', space=vmem, size = 0x1000, scoped, tag = 'output window, operand 0, single buffered']
    %16 = vsyncpa [#allocation3], 0
    %17 = vsyncpa [#allocation6], 0
    %18 = vsyncpa [#allocation9], 0
    %19 = vsyncpa [#allocation12], 0
    %20 = vsyncpa [#allocation4], 0
    // Predicated region
    $region2: #{tpu_custom_call.1} parent=1 // pred_check
      _
    $region3: #{tpu_custom_call.1} parent=1 // pred_check_branch
      %22 = sbr.rel (0) target = $region5
    $region4: #{tpu_custom_call.1} parent=1 // pred_region
      %s24 = ssub.s32 128, 128
      %25 = vsyncadd [#allocation3], %s24
      %s27 = sshll.u32 [#allocation2], 4
      %s28 = int_to_ptr.vmem [resolvable:$true] %s27
      %30 = dma.hbm_to_vmem [thread:$0]  %s0, 128, %s28, [#allocation3]
    $region5: #{tpu_custom_call.1} parent=1 // pred_fallthru
      _
    // Predicated region
    $region6: #{tpu_custom_call.1} parent=1 // pred_check
      _
    $region7: #{tpu_custom_call.1} parent=1 // pred_check_branch
      %32 = sbr.rel (0) target = $region9
    $region8: #{tpu_custom_call.1} parent=1 // pred_region
      %s34 = ssub.s32 2048, 2048
      %35 = vsyncadd [#allocation6], %s34
      %s36 = sshll.u32 [#allocation5], 4
      %s37 = int_to_ptr.vmem [resolvable:$true] %s36
      %42 = dma.hbm_to_vmem [thread:$0]  %s1, 2048, %s37, [#allocation6], 128, 128, 8
    $region9: #{tpu_custom_call.1} parent=1 // pred_fallthru
      _
    // Predicated region
    $region10: #{tpu_custom_call.1} parent=1 // pred_check
      _
    $region11: #{tpu_custom_call.1} parent=1 // pred_check_branch
      %44 = sbr.rel (0) target = $region13
    $region12: #{tpu_custom_call.1} parent=1 // pred_region
      _
    $region13: #{tpu_custom_call.1} parent=1 // pred_fallthru
      _
    // Predicated region
    $region14: #{tpu_custom_call.1} parent=1 // pred_check
      _
    $region15: #{tpu_custom_call.1} parent=1 // pred_check_branch
      %46 = sbr.rel (0) target = $region17
    $region16: #{tpu_custom_call.1} parent=1 // pred_region
      %s48 = ssub.s32 2048, 2048
      %49 = vsyncadd [#allocation6], %s48
      %s50 = sshll.u32 [#allocation7], 4
      %s51 = int_to_ptr.vmem [resolvable:$true] %s50
      %56 = dma.hbm_to_vmem [thread:$0]  %s3, 2048, %s51, [#allocation6], 128, 128, 8
    $region17: #{tpu_custom_call.1} parent=1 // pred_fallthru
      _
    // Predicated region
    $region18: #{tpu_custom_call.1} parent=1 // pred_check
      _
    $region19: #{tpu_custom_call.1} parent=1 // pred_check_branch
      %58 = sbr.rel (0) target = $region21
    $region20: #{tpu_custom_call.1} parent=1 // pred_region
      _
    $region21: #{tpu_custom_call.1} parent=1 // pred_fallthru
      _
    // Predicated region
    $region22: #{tpu_custom_call.1} parent=1 // pred_check
      _
    $region23: #{tpu_custom_call.1} parent=1 // pred_check_branch
      %60 = sbr.rel (0) target = $region25
    $region24: #{tpu_custom_call.1} parent=1 // pred_region
      %s62 = ssub.s32 2048, 2048
      %63 = vsyncadd [#allocation9], %s62
      %s64 = sshll.u32 [#allocation8], 4
      %s65 = int_to_ptr.vmem [resolvable:$true] %s64
      %70 = dma.hbm_to_vmem [thread:$0]  %s5, 2048, %s65, [#allocation9], 128, 128, 8
    $region25: #{tpu_custom_call.1} parent=1 // pred_fallthru
      _
    // Predicated region
    $region26: #{tpu_custom_call.1} parent=1 // pred_check
      _
    $region27: #{tpu_custom_call.1} parent=1 // pred_check_branch
      %72 = sbr.rel (0) target = $region29
    $region28: #{tpu_custom_call.1} parent=1 // pred_region
      _
    $region29: #{tpu_custom_call.1} parent=1 // pred_fallthru
      _
    // Predicated region
    $region30: #{tpu_custom_call.1} parent=1 // pred_check
      _
    $region31: #{tpu_custom_call.1} parent=1 // pred_check_branch
      %74 = sbr.rel (0) target = $region33
    $region32: #{tpu_custom_call.1} parent=1 // pred_region
      %s76 = ssub.s32 2048, 2048
      %77 = vsyncadd [#allocation9], %s76
      %s78 = sshll.u32 [#allocation10], 4
      %s79 = int_to_ptr.vmem [resolvable:$true] %s78
      %84 = dma.hbm_to_vmem [thread:$0]  %s7, 2048, %s79, [#allocation9], 128, 128, 8
    $region33: #{tpu_custom_call.1} parent=1 // pred_fallthru
      _
    // Predicated region
    $region34: #{tpu_custom_call.1} parent=1 // pred_check
      _
    $region35: #{tpu_custom_call.1} parent=1 // pred_check_branch
      %86 = sbr.rel (0) target = $region37
    $region36: #{tpu_custom_call.1} parent=1 // pred_region
      _
    $region37: #{tpu_custom_call.1} parent=1 // pred_fallthru
      _
    // Predicated region
    $region38: #{tpu_custom_call.1} parent=1 // pred_check
      _
    $region39: #{tpu_custom_call.1} parent=1 // pred_check_branch
      %88 = sbr.rel (0) target = $region41
    $region40: #{tpu_custom_call.1} parent=1 // pred_region
      %s90 = ssub.s32 2048, 2048
      %91 = vsyncadd [#allocation12], %s90
      %s92 = sshll.u32 [#allocation11], 4
      %s93 = int_to_ptr.vmem [resolvable:$true] %s92
      %98 = dma.hbm_to_vmem [thread:$0]  %s9, 2048, %s93, [#allocation12], 128, 128, 8
    $region41: #{tpu_custom_call.1} parent=1 // pred_fallthru
      _
    // Predicated region
    $region42: #{tpu_custom_call.1} parent=1 // pred_check
      _
    $region43: #{tpu_custom_call.1} parent=1 // pred_check_branch
      %100 = sbr.rel (0) target = $region45
    $region44: #{tpu_custom_call.1} parent=1 // pred_region
      _
    $region45: #{tpu_custom_call.1} parent=1 // pred_fallthru
      _
    // Predicated region
    $region46: #{tpu_custom_call.1} parent=1 // pred_check
      _
    $region47: #{tpu_custom_call.1} parent=1 // pred_check_branch
      %102 = sbr.rel (0) target = $region49
    $region48: #{tpu_custom_call.1} parent=1 // pred_region
      %103 = dma.done [#allocation3], 128
    $region49: #{tpu_custom_call.1} parent=1 // pred_fallthru
      _
    // Predicated region
    $region50: #{tpu_custom_call.1} parent=1 // pred_check
      _
    $region51: #{tpu_custom_call.1} parent=1 // pred_check_branch
      %105 = sbr.rel (0) target = $region53
    $region52: #{tpu_custom_call.1} parent=1 // pred_region
      %106 = dma.done [#allocation6], 2048
    $region53: #{tpu_custom_call.1} parent=1 // pred_fallthru
      _
    // Predicated region
    $region54: #{tpu_custom_call.1} parent=1 // pred_check
      _
    $region55: #{tpu_custom_call.1} parent=1 // pred_check_branch
      %108 = sbr.rel (0) target = $region57
    $region56: #{tpu_custom_call.1} parent=1 // pred_region
      %109 = dma.done [#allocation6], 2048
    $region57: #{tpu_custom_call.1} parent=1 // pred_fallthru
      _
    // Predicated region
    $region58: #{tpu_custom_call.1} parent=1 // pred_check
      _
    $region59: #{tpu_custom_call.1} parent=1 // pred_check_branch
      %111 = sbr.rel (0) target = $region61
    $region60: #{tpu_custom_call.1} parent=1 // pred_region
      %112 = dma.done [#allocation9], 2048
    $region61: #{tpu_custom_call.1} parent=1 // pred_fallthru
      _
    // Predicated region
    $region62: #{tpu_custom_call.1} parent=1 // pred_check
      _
    $region63: #{tpu_custom_call.1} parent=1 // pred_check_branch
      %114 = sbr.rel (0) target = $region65
    $region64: #{tpu_custom_call.1} parent=1 // pred_region
      %115 = dma.done [#allocation9], 2048
    $region65: #{tpu_custom_call.1} parent=1 // pred_fallthru
      _
    // Predicated region
    $region66: #{tpu_custom_call.1} parent=1 // pred_check
      _
    $region67: #{tpu_custom_call.1} parent=1 // pred_check_branch
      %117 = sbr.rel (0) target = $region69
    $region68: #{tpu_custom_call.1} parent=1 // pred_region
      %118 = dma.done [#allocation12], 2048
    $region69: #{tpu_custom_call.1} parent=1 // pred_fallthru
      _
    %v119 = vld [vmem:[#allocation2] sm:$0xff]
    %v120 = vld [vmem:[#allocation5] sm:$0xff]
    %v121 = vld [vmem:[#allocation5 + $0x8] sm:$0xff]
    %v122 = vld [vmem:[#allocation5 + $0x10] sm:$0xff]
    %v123 = vld [vmem:[#allocation5 + $0x18] sm:$0xff]
    %v124 = vld [vmem:[#allocation5 + $0x20] sm:$0xff]
    %v125 = vld [vmem:[#allocation5 + $0x28] sm:$0xff]
    %v126 = vld [vmem:[#allocation5 + $0x30] sm:$0xff]
    %v127 = vld [vmem:[#allocation5 + $0x38] sm:$0xff]
    %v128 = vld [vmem:[#allocation5 + $0x40] sm:$0xff]
    %v129 = vld [vmem:[#allocation5 + $0x48] sm:$0xff]
    %v130 = vld [vmem:[#allocation5 + $0x50] sm:$0xff]
    %v131 = vld [vmem:[#allocation5 + $0x58] sm:$0xff]
    %v132 = vld [vmem:[#allocation5 + $0x60] sm:$0xff]
    %v133 = vld [vmem:[#allocation5 + $0x68] sm:$0xff]
    %v134 = vld [vmem:[#allocation5 + $0x70] sm:$0xff]
    %v135 = vld [vmem:[#allocation5 + $0x78] sm:$0xff]
    %136 = vmatprep.subr.mxu0 0.0
    %137 = vmatpush1.msra.mxu0 %v120
    %138 = vmatprep.subr.mxu0 0.0
    %139 = vmatpush1.msra.mxu0 %v121
    %140 = vmatprep.subr.mxu0 0.0
    %141 = vmatpush1.msra.mxu0 %v122
    %142 = vmatprep.subr.mxu0 0.0
    %143 = vmatpush1.msra.mxu0 %v123
    %144 = vmatprep.subr.mxu0 0.0
    %145 = vmatpush1.msra.mxu0 %v124
    %146 = vmatprep.subr.mxu0 0.0
    %147 = vmatpush1.msra.mxu0 %v125
    %148 = vmatprep.subr.mxu0 0.0
    %149 = vmatpush1.msra.mxu0 %v126
    %150 = vmatprep.subr.mxu0 0.0
    %151 = vmatpush1.msra.mxu0 %v127
    %152 = vmatprep.subr.mxu0 0.0
    %153 = vmatpush1.msra.mxu0 %v128
    %154 = vmatprep.subr.mxu0 0.0
    %155 = vmatpush1.msra.mxu0 %v129
    %156 = vmatprep.subr.mxu0 0.0
    %157 = vmatpush1.msra.mxu0 %v130
    %158 = vmatprep.subr.mxu0 0.0
    %159 = vmatpush1.msra.mxu0 %v131
    %160 = vmatprep.subr.mxu0 0.0
    %161 = vmatpush1.msra.mxu0 %v132
    %162 = vmatprep.subr.mxu0 0.0
    %163 = vmatpush1.msra.mxu0 %v133
    %164 = vmatprep.subr.mxu0 0.0
    %165 = vmatpush1.msra.mxu0 %v134
    %166 = vmatprep.subr.mxu0 0.0
    %167 = vmatpush1.msra.mxu0 %v135
    %168 = vmatprep.subr.mxu0 0.0
    %169 = vmatpush1.msra.mxu0 0.0
    %170 = vmatprep.subr.mxu0 0.0
    %171 = vmatpush1.msra.mxu0 0.0
    %172 = vmatprep.subr.mxu0 0.0
    %173 = vmatpush1.msra.mxu0 0.0
    %174 = vmatprep.subr.mxu0 0.0
    %175 = vmatpush1.msra.mxu0 0.0
    %176 = vmatprep.subr.mxu0 0.0
    %177 = vmatpush1.msra.mxu0 0.0
    %178 = vmatprep.subr.mxu0 0.0
    %179 = vmatpush1.msra.mxu0 0.0
    %180 = vmatprep.subr.mxu0 0.0
    %181 = vmatpush1.msra.mxu0 0.0
    %182 = vmatprep.subr.mxu0 0.0
    %183 = vmatpush1.msra.mxu0 0.0
    %184 = vmatprep.subr.mxu0 0.0
    %185 = vmatpush1.msra.mxu0 0.0
    %186 = vmatprep.subr.mxu0 0.0
    %187 = vmatpush1.msra.mxu0 0.0
    %188 = vmatprep.subr.mxu0 0.0
    %189 = vmatpush1.msra.mxu0 0.0
    %190 = vmatprep.subr.mxu0 0.0
    %191 = vmatpush1.msra.mxu0 0.0
    %192 = vmatprep.subr.mxu0 0.0
    %193 = vmatpush1.msra.mxu0 0.0
    %194 = vmatprep.subr.mxu0 0.0
    %195 = vmatpush1.msra.mxu0 0.0
    %196 = vmatprep.subr.mxu0 0.0
    %197 = vmatpush1.msra.mxu0 0.0
    %198 = vmatprep.subr.mxu0 0.0
    %199 = vmatpush1.msra.mxu0 0.0
    %200 = vmatprep.mubr.f32.mxu0 0.0
    %201 = vmatmul.mubr.f32.gmra.mrb[0].mxu0 %v119
    %v202 = vpop.f32.mrb[0].mxu0
    %v203 = vadd.f32 0.0, %v202
    %v204 = vpop.f32.mrb[0].mxu0
    %205 = vdwg.mxu0
    %v206 = vld [vmem:[%s2] sm:$0x1]
    %v207 = vlaneseq
    %v208 = vshrl.u32 %v207, 7
    %v209 = vsub.s32 0, %v208
    %v210 = vrot.slane %v206, %v209
    %v211 = vmul.f32 %v203, %v210
    %v212 = vld [vmem:[%s2 + $0x1] sm:$0x1]
    %v213 = vlaneseq
    %v214 = vshrl.u32 %v213, 7
    %v215 = vsub.s32 0, %v214
    %v216 = vrot.slane %v212, %v215
    %v217 = vadd.f32 %v211, %v216
    %v218 = vmax.f32 %v217, 0.0
    %v219 = vld [vmem:[#allocation7] sm:$0xff]
    %v220 = vld [vmem:[#allocation7 + $0x8] sm:$0xff]
    %v221 = vld [vmem:[#allocation7 + $0x10] sm:$0xff]
    %v222 = vld [vmem:[#allocation7 + $0x18] sm:$0xff]
    %v223 = vld [vmem:[#allocation7 + $0x20] sm:$0xff]
    %v224 = vld [vmem:[#allocation7 + $0x28] sm:$0xff]
    %v225 = vld [vmem:[#allocation7 + $0x30] sm:$0xff]
    %v226 = vld [vmem:[#allocation7 + $0x38] sm:$0xff]
    %v227 = vld [vmem:[#allocation7 + $0x40] sm:$0xff]
    %v228 = vld [vmem:[#allocation7 + $0x48] sm:$0xff]
    %v229 = vld [vmem:[#allocation7 + $0x50] sm:$0xff]
    %v230 = vld [vmem:[#allocation7 + $0x58] sm:$0xff]
    %v231 = vld [vmem:[#allocation7 + $0x60] sm:$0xff]
    %v232 = vld [vmem:[#allocation7 + $0x68] sm:$0xff]
    %v233 = vld [vmem:[#allocation7 + $0x70] sm:$0xff]
    %v234 = vld [vmem:[#allocation7 + $0x78] sm:$0xff]
    %235 = vmatprep.subr.mxu0 0.0
    %236 = vmatpush1.msra.mxu0 %v219
    %237 = vmatprep.subr.mxu0 0.0
    %238 = vmatpush1.msra.mxu0 %v220
    %239 = vmatprep.subr.mxu0 0.0
    %240 = vmatpush1.msra.mxu0 %v221
    %241 = vmatprep.subr.mxu0 0.0
    %242 = vmatpush1.msra.mxu0 %v222
    %243 = vmatprep.subr.mxu0 0.0
    %244 = vmatpush1.msra.mxu0 %v223
    %245 = vmatprep.subr.mxu0 0.0
    %246 = vmatpush1.msra.mxu0 %v224
    %247 = vmatprep.subr.mxu0 0.0
    %248 = vmatpush1.msra.mxu0 %v225
    %249 = vmatprep.subr.mxu0 0.0
    %250 = vmatpush1.msra.mxu0 %v226
    %251 = vmatprep.subr.mxu0 0.0
    %252 = vmatpush1.msra.mxu0 %v227
    %253 = vmatprep.subr.mxu0 0.0
    %254 = vmatpush1.msra.mxu0 %v228
    %255 = vmatprep.subr.mxu0 0.0
    %256 = vmatpush1.msra.mxu0 %v229
    %257 = vmatprep.subr.mxu0 0.0
    %258 = vmatpush1.msra.mxu0 %v230
    %259 = vmatprep.subr.mxu0 0.0
    %260 = vmatpush1.msra.mxu0 %v231
    %261 = vmatprep.subr.mxu0 0.0
    %262 = vmatpush1.msra.mxu0 %v232
    %263 = vmatprep.subr.mxu0 0.0
    %264 = vmatpush1.msra.mxu0 %v233
    %265 = vmatprep.subr.mxu0 0.0
    %266 = vmatpush1.msra.mxu0 %v234
    %267 = vmatprep.subr.mxu0 0.0
    %268 = vmatpush1.msra.mxu0 0.0
    %269 = vmatprep.subr.mxu0 0.0
    %270 = vmatpush1.msra.mxu0 0.0
    %271 = vmatprep.subr.mxu0 0.0
    %272 = vmatpush1.msra.mxu0 0.0
    %273 = vmatprep.subr.mxu0 0.0
    %274 = vmatpush1.msra.mxu0 0.0
    %275 = vmatprep.subr.mxu0 0.0
    %276 = vmatpush1.msra.mxu0 0.0
    %277 = vmatprep.subr.mxu0 0.0
    %278 = vmatpush1.msra.mxu0 0.0
    %279 = vmatprep.subr.mxu0 0.0
    %280 = vmatpush1.msra.mxu0 0.0
    %281 = vmatprep.subr.mxu0 0.0
    %282 = vmatpush1.msra.mxu0 0.0
    %283 = vmatprep.subr.mxu0 0.0
    %284 = vmatpush1.msra.mxu0 0.0
    %285 = vmatprep.subr.mxu0 0.0
    %286 = vmatpush1.msra.mxu0 0.0
    %287 = vmatprep.subr.mxu0 0.0
    %288 = vmatpush1.msra.mxu0 0.0
    %289 = vmatprep.subr.mxu0 0.0
    %290 = vmatpush1.msra.mxu0 0.0
    %291 = vmatprep.subr.mxu0 0.0
    %292 = vmatpush1.msra.mxu0 0.0
    %293 = vmatprep.subr.mxu0 0.0
    %294 = vmatpush1.msra.mxu0 0.0
    %295 = vmatprep.subr.mxu0 0.0
    %296 = vmatpush1.msra.mxu0 0.0
    %297 = vmatprep.subr.mxu0 0.0
    %298 = vmatpush1.msra.mxu0 0.0
    %299 = vmatprep.mubr.f32.mxu0 0.0
    %300 = vmatmul.mubr.f32.gmra.mrb[0].mxu0 %v218
    %v301 = vpop.f32.mrb[0].mxu0
    %v302 = vadd.f32 0.0, %v301
    %v303 = vpop.f32.mrb[0].mxu0
    %304 = vdwg.mxu0
    %v305 = vld [vmem:[%s4] sm:$0x1]
    %v306 = vlaneseq
    %v307 = vshrl.u32 %v306, 7
    %v308 = vsub.s32 0, %v307
    %v309 = vrot.slane %v305, %v308
    %v310 = vmul.f32 %v302, %v309
    %v311 = vld [vmem:[%s4 + $0x1] sm:$0x1]
    %v312 = vlaneseq
    %v313 = vshrl.u32 %v312, 7
    %v314 = vsub.s32 0, %v313
    %v315 = vrot.slane %v311, %v314
    %v316 = vadd.f32 %v310, %v315
    %v317 = vmax.f32 %v316, 0.0
    %v318 = vld [vmem:[#allocation8] sm:$0xff]
    %v319 = vld [vmem:[#allocation8 + $0x8] sm:$0xff]
    %v320 = vld [vmem:[#allocation8 + $0x10] sm:$0xff]
    %v321 = vld [vmem:[#allocation8 + $0x18] sm:$0xff]
    %v322 = vld [vmem:[#allocation8 + $0x20] sm:$0xff]
    %v323 = vld [vmem:[#allocation8 + $0x28] sm:$0xff]
    %v324 = vld [vmem:[#allocation8 + $0x30] sm:$0xff]
    %v325 = vld [vmem:[#allocation8 + $0x38] sm:$0xff]
    %v326 = vld [vmem:[#allocation8 + $0x40] sm:$0xff]
    %v327 = vld [vmem:[#allocation8 + $0x48] sm:$0xff]
    %v328 = vld [vmem:[#allocation8 + $0x50] sm:$0xff]
    %v329 = vld [vmem:[#allocation8 + $0x58] sm:$0xff]
    %v330 = vld [vmem:[#allocation8 + $0x60] sm:$0xff]
    %v331 = vld [vmem:[#allocation8 + $0x68] sm:$0xff]
    %v332 = vld [vmem:[#allocation8 + $0x70] sm:$0xff]
    %v333 = vld [vmem:[#allocation8 + $0x78] sm:$0xff]
    %334 = vmatprep.subr.mxu0 0.0
    %335 = vmatpush1.msra.mxu0 %v318
    %336 = vmatprep.subr.mxu0 0.0
    %337 = vmatpush1.msra.mxu0 %v319
    %338 = vmatprep.subr.mxu0 0.0
    %339 = vmatpush1.msra.mxu0 %v320
    %340 = vmatprep.subr.mxu0 0.0
    %341 = vmatpush1.msra.mxu0 %v321
    %342 = vmatprep.subr.mxu0 0.0
    %343 = vmatpush1.msra.mxu0 %v322
    %344 = vmatprep.subr.mxu0 0.0
    %345 = vmatpush1.msra.mxu0 %v323
    %346 = vmatprep.subr.mxu0 0.0
    %347 = vmatpush1.msra.mxu0 %v324
    %348 = vmatprep.subr.mxu0 0.0
    %349 = vmatpush1.msra.mxu0 %v325
    %350 = vmatprep.subr.mxu0 0.0
    %351 = vmatpush1.msra.mxu0 %v326
    %352 = vmatprep.subr.mxu0 0.0
    %353 = vmatpush1.msra.mxu0 %v327
    %354 = vmatprep.subr.mxu0 0.0
    %355 = vmatpush1.msra.mxu0 %v328
    %356 = vmatprep.subr.mxu0 0.0
    %357 = vmatpush1.msra.mxu0 %v329
    %358 = vmatprep.subr.mxu0 0.0
    %359 = vmatpush1.msra.mxu0 %v330
    %360 = vmatprep.subr.mxu0 0.0
    %361 = vmatpush1.msra.mxu0 %v331
    %362 = vmatprep.subr.mxu0 0.0
    %363 = vmatpush1.msra.mxu0 %v332
    %364 = vmatprep.subr.mxu0 0.0
    %365 = vmatpush1.msra.mxu0 %v333
    %366 = vmatprep.subr.mxu0 0.0
    %367 = vmatpush1.msra.mxu0 0.0
    %368 = vmatprep.subr.mxu0 0.0
    %369 = vmatpush1.msra.mxu0 0.0
    %370 = vmatprep.subr.mxu0 0.0
    %371 = vmatpush1.msra.mxu0 0.0
    %372 = vmatprep.subr.mxu0 0.0
    %373 = vmatpush1.msra.mxu0 0.0
    %374 = vmatprep.subr.mxu0 0.0
    %375 = vmatpush1.msra.mxu0 0.0
    %376 = vmatprep.subr.mxu0 0.0
    %377 = vmatpush1.msra.mxu0 0.0
    %378 = vmatprep.subr.mxu0 0.0
    %379 = vmatpush1.msra.mxu0 0.0
    %380 = vmatprep.subr.mxu0 0.0
    %381 = vmatpush1.msra.mxu0 0.0
    %382 = vmatprep.subr.mxu0 0.0
    %383 = vmatpush1.msra.mxu0 0.0
    %384 = vmatprep.subr.mxu0 0.0
    %385 = vmatpush1.msra.mxu0 0.0
    %386 = vmatprep.subr.mxu0 0.0
    %387 = vmatpush1.msra.mxu0 0.0
    %388 = vmatprep.subr.mxu0 0.0
    %389 = vmatpush1.msra.mxu0 0.0
    %390 = vmatprep.subr.mxu0 0.0
    %391 = vmatpush1.msra.mxu0 0.0
    %392 = vmatprep.subr.mxu0 0.0
    %393 = vmatpush1.msra.mxu0 0.0
    %394 = vmatprep.subr.mxu0 0.0
    %395 = vmatpush1.msra.mxu0 0.0
    %396 = vmatprep.subr.mxu0 0.0
    %397 = vmatpush1.msra.mxu0 0.0
    %398 = vmatprep.mubr.f32.mxu0 0.0
    %399 = vmatmul.mubr.f32.gmra.mrb[0].mxu0 %v317
    %v400 = vpop.f32.mrb[0].mxu0
    %v401 = vadd.f32 0.0, %v400
    %v402 = vpop.f32.mrb[0].mxu0
    %403 = vdwg.mxu0
    %v404 = vld [vmem:[%s6] sm:$0x1]
    %v405 = vlaneseq
    %v406 = vshrl.u32 %v405, 7
    %v407 = vsub.s32 0, %v406
    %v408 = vrot.slane %v404, %v407
    %v409 = vmul.f32 %v401, %v408
    %v410 = vld [vmem:[%s6 + $0x1] sm:$0x1]
    %v411 = vlaneseq
    %v412 = vshrl.u32 %v411, 7
    %v413 = vsub.s32 0, %v412
    %v414 = vrot.slane %v410, %v413
    %v415 = vadd.f32 %v409, %v414
    %v416 = vmax.f32 %v415, 0.0
    %v417 = vld [vmem:[#allocation10] sm:$0xff]
    %v418 = vld [vmem:[#allocation10 + $0x8] sm:$0xff]
    %v419 = vld [vmem:[#allocation10 + $0x10] sm:$0xff]
    %v420 = vld [vmem:[#allocation10 + $0x18] sm:$0xff]
    %v421 = vld [vmem:[#allocation10 + $0x20] sm:$0xff]
    %v422 = vld [vmem:[#allocation10 + $0x28] sm:$0xff]
    %v423 = vld [vmem:[#allocation10 + $0x30] sm:$0xff]
    %v424 = vld [vmem:[#allocation10 + $0x38] sm:$0xff]
    %v425 = vld [vmem:[#allocation10 + $0x40] sm:$0xff]
    %v426 = vld [vmem:[#allocation10 + $0x48] sm:$0xff]
    %v427 = vld [vmem:[#allocation10 + $0x50] sm:$0xff]
    %v428 = vld [vmem:[#allocation10 + $0x58] sm:$0xff]
    %v429 = vld [vmem:[#allocation10 + $0x60] sm:$0xff]
    %v430 = vld [vmem:[#allocation10 + $0x68] sm:$0xff]
    %v431 = vld [vmem:[#allocation10 + $0x70] sm:$0xff]
    %v432 = vld [vmem:[#allocation10 + $0x78] sm:$0xff]
    %433 = vmatprep.subr.mxu0 0.0
    %434 = vmatpush1.msra.mxu0 %v417
    %435 = vmatprep.subr.mxu0 0.0
    %436 = vmatpush1.msra.mxu0 %v418
    %437 = vmatprep.subr.mxu0 0.0
    %438 = vmatpush1.msra.mxu0 %v419
    %439 = vmatprep.subr.mxu0 0.0
    %440 = vmatpush1.msra.mxu0 %v420
    %441 = vmatprep.subr.mxu0 0.0
    %442 = vmatpush1.msra.mxu0 %v421
    %443 = vmatprep.subr.mxu0 0.0
    %444 = vmatpush1.msra.mxu0 %v422
    %445 = vmatprep.subr.mxu0 0.0
    %446 = vmatpush1.msra.mxu0 %v423
    %447 = vmatprep.subr.mxu0 0.0
    %448 = vmatpush1.msra.mxu0 %v424
    %449 = vmatprep.subr.mxu0 0.0
    %450 = vmatpush1.msra.mxu0 %v425
    %451 = vmatprep.subr.mxu0 0.0
    %452 = vmatpush1.msra.mxu0 %v426
    %453 = vmatprep.subr.mxu0 0.0
    %454 = vmatpush1.msra.mxu0 %v427
    %455 = vmatprep.subr.mxu0 0.0
    %456 = vmatpush1.msra.mxu0 %v428
    %457 = vmatprep.subr.mxu0 0.0
    %458 = vmatpush1.msra.mxu0 %v429
    %459 = vmatprep.subr.mxu0 0.0
    %460 = vmatpush1.msra.mxu0 %v430
    %461 = vmatprep.subr.mxu0 0.0
    %462 = vmatpush1.msra.mxu0 %v431
    %463 = vmatprep.subr.mxu0 0.0
    %464 = vmatpush1.msra.mxu0 %v432
    %465 = vmatprep.subr.mxu0 0.0
    %466 = vmatpush1.msra.mxu0 0.0
    %467 = vmatprep.subr.mxu0 0.0
    %468 = vmatpush1.msra.mxu0 0.0
    %469 = vmatprep.subr.mxu0 0.0
    %470 = vmatpush1.msra.mxu0 0.0
    %471 = vmatprep.subr.mxu0 0.0
    %472 = vmatpush1.msra.mxu0 0.0
    %473 = vmatprep.subr.mxu0 0.0
    %474 = vmatpush1.msra.mxu0 0.0
    %475 = vmatprep.subr.mxu0 0.0
    %476 = vmatpush1.msra.mxu0 0.0
    %477 = vmatprep.subr.mxu0 0.0
    %478 = vmatpush1.msra.mxu0 0.0
    %479 = vmatprep.subr.mxu0 0.0
    %480 = vmatpush1.msra.mxu0 0.0
    %481 = vmatprep.subr.mxu0 0.0
    %482 = vmatpush1.msra.mxu0 0.0
    %483 = vmatprep.subr.mxu0 0.0
    %484 = vmatpush1.msra.mxu0 0.0
    %485 = vmatprep.subr.mxu0 0.0
    %486 = vmatpush1.msra.mxu0 0.0
    %487 = vmatprep.subr.mxu0 0.0
    %488 = vmatpush1.msra.mxu0 0.0
    %489 = vmatprep.subr.mxu0 0.0
    %490 = vmatpush1.msra.mxu0 0.0
    %491 = vmatprep.subr.mxu0 0.0
    %492 = vmatpush1.msra.mxu0 0.0
    %493 = vmatprep.subr.mxu0 0.0
    %494 = vmatpush1.msra.mxu0 0.0
    %495 = vmatprep.subr.mxu0 0.0
    %496 = vmatpush1.msra.mxu0 0.0
    %497 = vmatprep.mubr.f32.mxu0 0.0
    %498 = vmatmul.mubr.f32.gmra.mrb[0].mxu0 %v416
    %v499 = vpop.f32.mrb[0].mxu0
    %v500 = vadd.f32 0.0, %v499
    %v501 = vpop.f32.mrb[0].mxu0
    %502 = vdwg.mxu0
    %v503 = vld [vmem:[%s8] sm:$0x1]
    %v504 = vlaneseq
    %v505 = vshrl.u32 %v504, 7
    %v506 = vsub.s32 0, %v505
    %v507 = vrot.slane %v503, %v506
    %v508 = vmul.f32 %v500, %v507
    %v509 = vld [vmem:[%s8 + $0x1] sm:$0x1]
    %v510 = vlaneseq
    %v511 = vshrl.u32 %v510, 7
    %v512 = vsub.s32 0, %v511
    %v513 = vrot.slane %v509, %v512
    %v514 = vadd.f32 %v508, %v513
    %v515 = vmax.f32 %v514, 0.0
    %v516 = vld [vmem:[#allocation11] sm:$0xff]
    %v517 = vld [vmem:[#allocation11 + $0x8] sm:$0xff]
    %v518 = vld [vmem:[#allocation11 + $0x10] sm:$0xff]
    %v519 = vld [vmem:[#allocation11 + $0x18] sm:$0xff]
    %v520 = vld [vmem:[#allocation11 + $0x20] sm:$0xff]
    %v521 = vld [vmem:[#allocation11 + $0x28] sm:$0xff]
    %v522 = vld [vmem:[#allocation11 + $0x30] sm:$0xff]
    %v523 = vld [vmem:[#allocation11 + $0x38] sm:$0xff]
    %v524 = vld [vmem:[#allocation11 + $0x40] sm:$0xff]
    %v525 = vld [vmem:[#allocation11 + $0x48] sm:$0xff]
    %v526 = vld [vmem:[#allocation11 + $0x50] sm:$0xff]
    %v527 = vld [vmem:[#allocation11 + $0x58] sm:$0xff]
    %v528 = vld [vmem:[#allocation11 + $0x60] sm:$0xff]
    %v529 = vld [vmem:[#allocation11 + $0x68] sm:$0xff]
    %v530 = vld [vmem:[#allocation11 + $0x70] sm:$0xff]
    %v531 = vld [vmem:[#allocation11 + $0x78] sm:$0xff]
    %v532 = vld [vmem:[%s10] sm:$0x1]
    %v534 = vlaneseq
    %v535 = vshrl.u32 %v534, 7
    %v536 = vsub.s32 0, %v535
    %v537 = vrot.slane %v532, %v536
    %539 = vmatprep.subr.mxu0 0.0
    %540 = vmatpush1.msra.mxu0 %v516
    %541 = vmatprep.subr.mxu0 0.0
    %542 = vmatpush1.msra.mxu0 %v517
    %543 = vmatprep.subr.mxu0 0.0
    %544 = vmatpush1.msra.mxu0 %v518
    %545 = vmatprep.subr.mxu0 0.0
    %546 = vmatpush1.msra.mxu0 %v519
    %547 = vmatprep.subr.mxu0 0.0
    %548 = vmatpush1.msra.mxu0 %v520
    %549 = vmatprep.subr.mxu0 0.0
    %550 = vmatpush1.msra.mxu0 %v521
    %551 = vmatprep.subr.mxu0 0.0
    %552 = vmatpush1.msra.mxu0 %v522
    %553 = vmatprep.subr.mxu0 0.0
    %554 = vmatpush1.msra.mxu0 %v523
    %555 = vmatprep.subr.mxu0 0.0
    %556 = vmatpush1.msra.mxu0 %v524
    %557 = vmatprep.subr.mxu0 0.0
    %558 = vmatpush1.msra.mxu0 %v525
    %559 = vmatprep.subr.mxu0 0.0
    %560 = vmatpush1.msra.mxu0 %v526
    %561 = vmatprep.subr.mxu0 0.0
    %562 = vmatpush1.msra.mxu0 %v527
    %563 = vmatprep.subr.mxu0 0.0
    %564 = vmatpush1.msra.mxu0 %v528
    %565 = vmatprep.subr.mxu0 0.0
    %566 = vmatpush1.msra.mxu0 %v529
    %567 = vmatprep.subr.mxu0 0.0
    %568 = vmatpush1.msra.mxu0 %v530
    %569 = vmatprep.subr.mxu0 0.0
    %570 = vmatpush1.msra.mxu0 %v531
    %571 = vmatprep.subr.mxu0 0.0
    %572 = vmatpush1.msra.mxu0 0.0
    %573 = vmatprep.subr.mxu0 0.0
    %574 = vmatpush1.msra.mxu0 0.0
    %575 = vmatprep.subr.mxu0 0.0
    %576 = vmatpush1.msra.mxu0 0.0
    %577 = vmatprep.subr.mxu0 0.0
    %578 = vmatpush1.msra.mxu0 0.0
    %579 = vmatprep.subr.mxu0 0.0
    %580 = vmatpush1.msra.mxu0 0.0
    %581 = vmatprep.subr.mxu0 0.0
    %582 = vmatpush1.msra.mxu0 0.0
    %583 = vmatprep.subr.mxu0 0.0
    %584 = vmatpush1.msra.mxu0 0.0
    %585 = vmatprep.subr.mxu0 0.0
    %586 = vmatpush1.msra.mxu0 0.0
    %587 = vmatprep.subr.mxu0 0.0
    %588 = vmatpush1.msra.mxu0 0.0
    %589 = vmatprep.subr.mxu0 0.0
    %590 = vmatpush1.msra.mxu0 0.0
    %591 = vmatprep.subr.mxu0 0.0
    %592 = vmatpush1.msra.mxu0 0.0
    %593 = vmatprep.subr.mxu0 0.0
    %594 = vmatpush1.msra.mxu0 0.0
    %595 = vmatprep.subr.mxu0 0.0
    %596 = vmatpush1.msra.mxu0 0.0
    %597 = vmatprep.subr.mxu0 0.0
    %598 = vmatpush1.msra.mxu0 0.0
    %599 = vmatprep.subr.mxu0 0.0
    %600 = vmatpush1.msra.mxu0 0.0
    %601 = vmatprep.subr.mxu0 0.0
    %602 = vmatpush1.msra.mxu0 0.0
    %603 = vmatprep.mubr.f32.mxu0 0.0
    %604 = vmatmul.mubr.f32.gmra.mrb[0].mxu0 %v515
    %v605 = vpop.f32.mrb[0].mxu0
    %v606 = vadd.f32 %v537, %v605
    %v607 = vpop.f32.mrb[0].mxu0
    %608 = vdwg.mxu0
    %609 = vst [vmem:[#allocation13] sm:$0xff] %v606
    // Predicated region
    $region70: #{tpu_custom_call.1} parent=1 // pred_check
      _
    $region71: #{tpu_custom_call.1} parent=1 // pred_check_branch
      %611 = sbr.rel (0) target = $region73
    $region72: #{tpu_custom_call.1} parent=1 // pred_region
      %s613 = ssub.s32 128, 128
      %614 = vsyncadd [#allocation4], %s613
      %s616 = sshll.u32 [#allocation13], 4
      %s617 = int_to_ptr.vmem [resolvable:$true] %s616
      %619 = dma.vmem_to_hbm [thread:$0]  %s617, 128, %s11, [#allocation4]
    $region73: #{tpu_custom_call.1} parent=1 // pred_fallthru
      _
    // Predicated region
    $region74: #{tpu_custom_call.1} parent=1 // pred_check
      _
    $region75: #{tpu_custom_call.1} parent=1 // pred_check_branch
      %621 = sbr.rel (0) target = $region77
    $region76: #{tpu_custom_call.1} parent=1 // pred_region
      %622 = dma.done [#allocation4], 128
    $region77: #{tpu_custom_call.1} parent=1 // pred_fallthru
      _
    %623 = vsyncpa [#allocation3], 1
    %624 = vsyncpa [#allocation6], 1
    %625 = vsyncpa [#allocation9], 1
    %626 = vsyncpa [#allocation12], 1
    %627 = vsyncpa [#allocation4], 1

</llo_original>
